<compile_context>
chip_gen: v6e
topology: v6e:2x2x1
jax: 0.10.0
libtpu: 0.0.40
codegen_flags: <defaults>
</compile_context>

<pallas_src>
import jax
import jax.numpy as jnp
from jax.experimental import pallas as pl
from jax.experimental.pallas import tpu as pltpu


def _round_up(x, m):
    return (x + m - 1) // m * m


def esm_mlp_kernel(h_ref, m_ref, w1_ref, b1_ref, w2_ref, b2_ref,
                   w3_ref, b3_ref, out_ref, sum_h_ref, sum_m_ref):
    """Streaming masked-mean pool over the seq grid axis + 3-layer MLP epilogue."""
    s = pl.program_id(1)

    @pl.when(s == 0)
    def _init():
        sum_h_ref[...] = jnp.zeros_like(sum_h_ref)
        sum_m_ref[...] = jnp.zeros_like(sum_m_ref)

    # Pooling arithmetic in f32 (bf16 is only used for the HBM stream).
    h = h_ref[...].astype(jnp.float32)                       # (TB, TS, H)
    m = m_ref[...]                                           # (TB, TS) f32
    sum_h_ref[...] += jnp.sum(h * m[:, :, None], axis=1)     # (TB, H)
    sum_m_ref[...] += jnp.sum(m, axis=1, keepdims=True)      # (TB, 1)

    @pl.when(s == pl.num_programs(1) - 1)
    def _finalize():
        # pooled = sum_hidden / sum_mask (reciprocal runs on the otherwise-idle EUP slot)
        pooled = sum_h_ref[...] * pl.reciprocal(sum_m_ref[...], approx=True)
        x = jnp.dot(pooled, w1_ref[...], preferred_element_type=jnp.float32)
        x = jnp.maximum(x + b1_ref[...], 0.0)
        x = jnp.dot(x, w2_ref[...], preferred_element_type=jnp.float32)
        x = jnp.maximum(x + b2_ref[...], 0.0)
        x = jnp.dot(x, w3_ref[...], preferred_element_type=jnp.float32)
        out_ref[...] = x + b3_ref[...]


def esm_with_mlp_forward(hidden_states, attention_mask, params,
                         batch_tile=None, seq_tile=None):
    """Pallas wrapper: tiled masked-mean pooling + MLP decoder."""
    B, S, H = hidden_states.shape
    out_dim = params["w3"].shape[1]

    # bf16 stream for the dominant (B, S, H) HBM read; f32 everywhere else.
    h = hidden_states.astype(jnp.bfloat16)
    m = attention_mask.astype(jnp.float32)

    # --- tile selection: big batch tiles fill MXU rows, seq tiles fit VMEM ---
    TB = batch_tile if batch_tile is not None else min(_round_up(B, 8), 128)
    B_pad = _round_up(B, TB)
    TS = seq_tile if seq_tile is not None else (S if S <= 256 else 256)
    S_pad = _round_up(S, TS)

    if (B_pad, S_pad) != (B, S):
        # Zero padding: padded positions carry mask 0 -> contribute nothing to sums.
        h = jnp.pad(h, ((0, B_pad - B), (0, S_pad - S), (0, 0)))
        m = jnp.pad(m, ((0, B_pad - B), (0, S_pad - S)))

    # Lane-dense output: pad the final Linear out to a multiple of 128 lanes.
    OUT_PAD = _round_up(max(out_dim, 128), 128)
    w1, b1 = params["w1"].astype(jnp.float32), params["b1"].astype(jnp.float32)
    w2, b2 = params["w2"].astype(jnp.float32), params["b2"].astype(jnp.float32)
    w3 = jnp.pad(params["w3"].astype(jnp.float32), ((0, 0), (0, OUT_PAD - out_dim)))
    b3 = jnp.pad(params["b3"].astype(jnp.float32), ((0, 0), (0, OUT_PAD - out_dim)))

    grid = (B_pad // TB, S_pad // TS)

    def const_spec(shape):
        # Constant block index -> fetched once, stays VMEM-resident.
        return pl.BlockSpec(shape, lambda b, s: (0,) * len(shape))

    in_specs = [
        pl.BlockSpec((TB, TS, H), lambda b, s: (b, s, 0)),   # hidden_states stream
        pl.BlockSpec((TB, TS), lambda b, s: (b, s)),         # attention_mask stream
        const_spec(w1.shape), const_spec(b1.shape),
        const_spec(w2.shape), const_spec(b2.shape),
        const_spec(w3.shape), const_spec(b3.shape),
    ]
    out_spec = pl.BlockSpec((TB, OUT_PAD), lambda b, s: (b, 0))

    # Scoped-VMEM budget from tile sizes; capped at 32 MiB (safe on v5e/v6e/v7x).
    bytes_needed = (
        2 * TB * TS * H * 2                                   # hidden (bf16, 2 buffers)
        + 2 * TB * TS * 4                                     # mask
        + 2 * 4 * (w1.size + b1.size + w2.size + b2.size + w3.size + b3.size)
        + 2 * TB * OUT_PAD * 4                                # output
        + TB * H * 4 + TB * 128 * 4                           # accumulators (lane-padded)
    )
    vmem_limit = int(min(32 * 1024 * 1024, max(2 * bytes_needed, 4 * 1024 * 1024)))

    out_padded = pl.pallas_call(
        esm_mlp_kernel,
        out_shape=jax.ShapeDtypeStruct((B_pad, OUT_PAD), jnp.float32),
        grid_spec=pltpu.PrefetchScalarGridSpec(
            num_scalar_prefetch=0,
            grid=grid,
            in_specs=in_specs,
            out_specs=out_spec,
            scratch_shapes=[
                pltpu.VMEM((TB, H), jnp.float32),   # sum_hidden accumulator
                pltpu.VMEM((TB, 1), jnp.float32),   # sum_mask accumulator
            ],
        ),
        compiler_params=pltpu.CompilerParams(
            dimension_semantics=("parallel", "arbitrary"),
            vmem_limit_bytes=vmem_limit,
        ),
    )(h, m, w1, b1, w2, b2, w3, b3)

    return out_padded[:B, :out_dim]


def init_params(key, hidden_dim, out_dim):
    """Deterministic MLP parameter init (shapes from MLP.__init__, W stored transposed)."""
    k1, k2, k3 = jax.random.split(key, 3)
    scale = 0.05
    return {
        "w1": scale * jax.random.normal(k1, (hidden_dim, 128), jnp.float32),
        "b1": jnp.zeros((1, 128), jnp.float32),
        "w2": scale * jax.random.normal(k2, (128, 64), jnp.float32),
        "b2": jnp.zeros((1, 64), jnp.float32),
        "w3": scale * jax.random.normal(k3, (64, out_dim), jnp.float32),
        "b3": jnp.zeros((1, out_dim), jnp.float32),
    }


def synthetic_esm_hidden_states(key, token_ids, hidden_dim):
    """Stand-in for the pretrained ESM encoder: embedding-table lookup (plain-JAX glue)."""
    vocab = 32  # 26 letters + special-token headroom
    table = jax.random.normal(key, (vocab, hidden_dim), jnp.float32)
    return table[token_ids]  # (B, S, H)


def reference_forward(hidden_states, attention_mask, params):
    """Pure-JAX reference of the same math (masked mean pool + MLP)."""
    m = attention_mask[:, :, None]
    pooled = jnp.sum(hidden_states * m, axis=1) / jnp.sum(m, axis=1)
    x = jnp.maximum(pooled @ params["w1"] + params["b1"], 0.0)
    x = jnp.maximum(x @ params["w2"] + params["b2"], 0.0)
    return x @ params["w3"] + params["b3"]


if __name__ == "__main__":
    key = jax.random.PRNGKey(0)
    k_seq, k_emb, k_par = jax.random.split(key, 3)

    B, S, H, OUT = 2, 8, 32, 1  # batch, seq, decoder_input_dim, output_dim

    # "sequences": small-int char codes; tokenization emulated by using the
    # codes directly as token ids plus a padding-style attention mask.
    token_ids = jax.random.randint(k_seq, (B, S), 0, 26)
    attention_mask = jnp.array(
        [[1.0] * S,
         [1.0] * 5 + [0.0] * (S - 5)], dtype=jnp.float32)

    hidden_states = synthetic_esm_hidden_states(k_emb, token_ids, H)  # (B, S, H)
    # Quantize once to bf16-representable values so the kernel's bf16 stream is
    # lossless relative to the f32 reference.
    hidden_states = hidden_states.astype(jnp.bfloat16).astype(jnp.float32)
    params = init_params(k_par, H, OUT)

    out = esm_with_mlp_forward(hidden_states, attention_mask, params)
    out = jax.block_until_ready(out)

    ref = reference_forward(hidden_states, attention_mask, params)
    assert out.shape == (B, OUT), out.shape
    # Tolerance covers the approx (EUP) reciprocal in the pooling divide.
    assert jnp.allclose(out, ref, atol=5e-3, rtol=5e-3), (out, ref)

    print("KERNEL_OK")
</pallas_src>

<mosaic_0001>
module attributes {stable_mosaic.version = 11 : i64} {
  func.func @esm_mlp_kernel(%arg0: i32, %arg1: i32, %arg2: memref<8x8x32xbf16, #tpu.memory_space<vmem>>, %arg3: memref<8x8xf32, #tpu.memory_space<vmem>>, %arg4: memref<32x128xf32, #tpu.memory_space<vmem>>, %arg5: memref<1x128xf32, #tpu.memory_space<vmem>>, %arg6: memref<128x64xf32, #tpu.memory_space<vmem>>, %arg7: memref<1x64xf32, #tpu.memory_space<vmem>>, %arg8: memref<64x128xf32, #tpu.memory_space<vmem>>, %arg9: memref<1x128xf32, #tpu.memory_space<vmem>>, %arg10: memref<8x128xf32, #tpu.memory_space<vmem>>, %arg11: memref<8x32xf32, #tpu.memory_space<vmem>>, %arg12: memref<8x1xf32, #tpu.memory_space<vmem>>) attributes {dimension_semantics = [#tpu.dimension_semantics<parallel>, #tpu.dimension_semantics<arbitrary>], iteration_bounds = array<i64: 1, 1>, scalar_prefetch = 0 : i64, scratch_operands = 2 : i64, tpu.core_type = #tpu.core_type<tc>, window_params = [{transform_indices = @transform_0, window_bounds = array<i64: 8, 8, 32>}, {transform_indices = @transform_1, window_bounds = array<i64: 8, 8>}, {pipeline_mode = #tpu.pipeline_mode<synchronous>, transform_indices = @transform_2, window_bounds = array<i64: 32, 128>}, {pipeline_mode = #tpu.pipeline_mode<synchronous>, transform_indices = @transform_3, window_bounds = array<i64: 1, 128>}, {pipeline_mode = #tpu.pipeline_mode<synchronous>, transform_indices = @transform_4, window_bounds = array<i64: 128, 64>}, {pipeline_mode = #tpu.pipeline_mode<synchronous>, transform_indices = @transform_5, window_bounds = array<i64: 1, 64>}, {pipeline_mode = #tpu.pipeline_mode<synchronous>, transform_indices = @transform_6, window_bounds = array<i64: 64, 128>}, {pipeline_mode = #tpu.pipeline_mode<synchronous>, transform_indices = @transform_7, window_bounds = array<i64: 1, 128>}, {transform_indices = @transform_8, window_bounds = array<i64: 8, 128>}]} {
    %c0_i32 = arith.constant 0 : i32
    %0 = arith.cmpi eq, %arg1, %c0_i32 : i32
    %1 = arith.extui %0 : i1 to i32
    %c0_i32_0 = arith.constant 0 : i32
    %2 = arith.cmpi ne, %1, %c0_i32_0 : i32
    scf.if %2 {
      %cst_16 = arith.constant 0.000000e+00 : f32
      %21 = vector.broadcast %cst_16 : f32 to vector<8x32xf32>
      %c0_17 = arith.constant 0 : index
      %c0_18 = arith.constant 0 : index
      %22 = vector.load %arg11[%c0_17, %c0_18] : memref<8x32xf32, #tpu.memory_space<vmem>>, vector<8x32xf32>
      tpu.vector_store %arg11[%c0_17, %c0_18], %21 {strides = array<i32>} : memref<8x32xf32, #tpu.memory_space<vmem>>, vector<8x32xf32>,
      %cst_19 = arith.constant 0.000000e+00 : f32
      %23 = vector.broadcast %cst_19 : f32 to vector<8x1xf32>
      %c0_20 = arith.constant 0 : index
      %c0_21 = arith.constant 0 : index
      %24 = vector.load %arg12[%c0_20, %c0_21] : memref<8x1xf32, #tpu.memory_space<vmem>>, vector<8x1xf32>
      tpu.vector_store %arg12[%c0_20, %c0_21], %23 {strides = array<i32>} : memref<8x1xf32, #tpu.memory_space<vmem>>, vector<8x1xf32>,
    } else {
    }
    %c0 = arith.constant 0 : index
    %c0_1 = arith.constant 0 : index
    %c0_2 = arith.constant 0 : index
    %3 = vector.load %arg2[%c0, %c0_1, %c0_2] : memref<8x8x32xbf16, #tpu.memory_space<vmem>>, vector<8x8x32xbf16>
    %4 = arith.extf %3 : vector<8x8x32xbf16> to vector<8x8x32xf32>
    %c0_3 = arith.constant 0 : index
    %c0_4 = arith.constant 0 : index
    %5 = vector.load %arg3[%c0_3, %c0_4] : memref<8x8xf32, #tpu.memory_space<vmem>>, vector<8x8xf32>
    %c0_5 = arith.constant 0 : index
    %c0_6 = arith.constant 0 : index
    %6 = vector.load %arg11[%c0_5, %c0_6] : memref<8x32xf32, #tpu.memory_space<vmem>>, vector<8x32xf32>
    %7 = vector.shape_cast %5 : vector<8x8xf32> to vector<8x8x1xf32>
    %8 = vector.broadcast %7 : vector<8x8x1xf32> to vector<8x8x32xf32>
    %9 = arith.mulf %4, %8 : vector<8x8x32xf32>
    %cst = arith.constant dense<0.000000e+00> : vector<8x32xf32>
    %10 = vector.multi_reduction <add>, %9, %cst [1] : vector<8x8x32xf32> to vector<8x32xf32>
    %11 = arith.addf %6, %10 : vector<8x32xf32>
    %c0_7 = arith.constant 0 : index
    %c0_8 = arith.constant 0 : index
    %12 = vector.load %arg11[%c0_7, %c0_8] : memref<8x32xf32, #tpu.memory_space<vmem>>, vector<8x32xf32>
    tpu.vector_store %arg11[%c0_7, %c0_8], %11 {strides = array<i32>} : memref<8x32xf32, #tpu.memory_space<vmem>>, vector<8x32xf32>,
    %c0_9 = arith.constant 0 : index
    %c0_10 = arith.constant 0 : index
    %13 = vector.load %arg12[%c0_9, %c0_10] : memref<8x1xf32, #tpu.memory_space<vmem>>, vector<8x1xf32>
    %cst_11 = arith.constant dense<0.000000e+00> : vector<8xf32>
    %14 = vector.multi_reduction <add>, %5, %cst_11 [1] : vector<8x8xf32> to vector<8xf32>
    %15 = vector.shape_cast %14 : vector<8xf32> to vector<8x1xf32>
    %16 = arith.addf %13, %15 : vector<8x1xf32>
    %c0_12 = arith.constant 0 : index
    %c0_13 = arith.constant 0 : index
    %17 = vector.load %arg12[%c0_12, %c0_13] : memref<8x1xf32, #tpu.memory_space<vmem>>, vector<8x1xf32>
    tpu.vector_store %arg12[%c0_12, %c0_13], %16 {strides = array<i32>} : memref<8x1xf32, #tpu.memory_space<vmem>>, vector<8x1xf32>,
    %c0_i32_14 = arith.constant 0 : i32
    %18 = arith.cmpi eq, %arg1, %c0_i32_14 : i32
    %19 = arith.extui %18 : i1 to i32
    %c0_i32_15 = arith.constant 0 : i32
    %20 = arith.cmpi ne, %19, %c0_i32_15 : i32
    scf.if %20 {
      %c0_16 = arith.constant 0 : index
      %c0_17 = arith.constant 0 : index
      %21 = vector.load %arg11[%c0_16, %c0_17] : memref<8x32xf32, #tpu.memory_space<vmem>>, vector<8x32xf32>
      %c0_18 = arith.constant 0 : index
      %c0_19 = arith.constant 0 : index
      %22 = vector.load %arg12[%c0_18, %c0_19] : memref<8x1xf32, #tpu.memory_space<vmem>>, vector<8x1xf32>
      %23 = tpu.reciprocal %22 {approx = true} : vector<8x1xf32> -> vector<8x1xf32>
      %24 = vector.broadcast %23 : vector<8x1xf32> to vector<8x32xf32>
      %25 = arith.mulf %21, %24 : vector<8x32xf32>
      %c0_20 = arith.constant 0 : index
      %c0_21 = arith.constant 0 : index
      %26 = vector.load %arg4[%c0_20, %c0_21] : memref<32x128xf32, #tpu.memory_space<vmem>>, vector<32x128xf32>
      %cst_22 = arith.constant dense<0.000000e+00> : vector<8x128xf32>
      %27 = tpu.matmul %25, %26, %cst_22 {dimension_numbers = #tpu.dot_dimension_numbers<[1], [0], [0], [1], [0, 0, 1, 1], [], []>} : vector<8x32xf32>, vector<32x128xf32>, vector<8x128xf32> -> vector<8x128xf32>
      %c0_23 = arith.constant 0 : index
      %c0_24 = arith.constant 0 : index
      %28 = vector.load %arg5[%c0_23, %c0_24] : memref<1x128xf32, #tpu.memory_space<vmem>>, vector<1x128xf32>
      %29 = vector.broadcast %28 : vector<1x128xf32> to vector<8x128xf32>
      %30 = arith.addf %27, %29 : vector<8x128xf32>
      %cst_25 = arith.constant 0.000000e+00 : f32
      %31 = vector.broadcast %cst_25 : f32 to vector<8x128xf32>
      %32 = arith.maximumf %30, %31 : vector<8x128xf32>
      %c0_26 = arith.constant 0 : index
      %c0_27 = arith.constant 0 : index
      %33 = vector.load %arg6[%c0_26, %c0_27] : memref<128x64xf32, #tpu.memory_space<vmem>>, vector<128x64xf32>
      %cst_28 = arith.constant dense<0.000000e+00> : vector<8x64xf32>
      %34 = tpu.matmul %32, %33, %cst_28 {dimension_numbers = #tpu.dot_dimension_numbers<[1], [0], [0], [1], [0, 0, 1, 1], [], []>} : vector<8x128xf32>, vector<128x64xf32>, vector<8x64xf32> -> vector<8x64xf32>
      %c0_29 = arith.constant 0 : index
      %c0_30 = arith.constant 0 : index
      %35 = vector.load %arg7[%c0_29, %c0_30] : memref<1x64xf32, #tpu.memory_space<vmem>>, vector<1x64xf32>
      %36 = vector.broadcast %35 : vector<1x64xf32> to vector<8x64xf32>
      %37 = arith.addf %34, %36 : vector<8x64xf32>
      %cst_31 = arith.constant 0.000000e+00 : f32
      %38 = vector.broadcast %cst_31 : f32 to vector<8x64xf32>
      %39 = arith.maximumf %37, %38 : vector<8x64xf32>
      %c0_32 = arith.constant 0 : index
      %c0_33 = arith.constant 0 : index
      %40 = vector.load %arg8[%c0_32, %c0_33] : memref<64x128xf32, #tpu.memory_space<vmem>>, vector<64x128xf32>
      %cst_34 = arith.constant dense<0.000000e+00> : vector<8x128xf32>
      %41 = tpu.matmul %39, %40, %cst_34 {dimension_numbers = #tpu.dot_dimension_numbers<[1], [0], [0], [1], [0, 0, 1, 1], [], []>} : vector<8x64xf32>, vector<64x128xf32>, vector<8x128xf32> -> vector<8x128xf32>
      %c0_35 = arith.constant 0 : index
      %c0_36 = arith.constant 0 : index
      %42 = vector.load %arg9[%c0_35, %c0_36] : memref<1x128xf32, #tpu.memory_space<vmem>>, vector<1x128xf32>
      %43 = vector.broadcast %42 : vector<1x128xf32> to vector<8x128xf32>
      %44 = arith.addf %41, %43 : vector<8x128xf32>
      %c0_37 = arith.constant 0 : index
      %c0_38 = arith.constant 0 : index
      %45 = vector.load %arg10[%c0_37, %c0_38] : memref<8x128xf32, #tpu.memory_space<vmem>>, vector<8x128xf32>
      tpu.vector_store %arg10[%c0_37, %c0_38], %44 {strides = array<i32>} : memref<8x128xf32, #tpu.memory_space<vmem>>, vector<8x128xf32>,
    } else {
    }
    return
  }
  func.func @transform_0(%arg0: i32, %arg1: i32) -> (i32, i32, i32) {
    %c0_i32 = arith.constant 0 : i32
    %c0_i32_0 = arith.constant 0 : i32
    return %arg0, %arg1, %c0_i32 : i32, i32, i32
  }
  func.func @transform_1(%arg0: i32, %arg1: i32) -> (i32, i32) {
    %c0_i32 = arith.constant 0 : i32
    return %arg0, %arg1 : i32, i32
  }
  func.func @transform_2(%arg0: i32, %arg1: i32) -> (i32, i32) {
    %c0_i32 = arith.constant 0 : i32
    %c0_i32_0 = arith.constant 0 : i32
    %c0_i32_1 = arith.constant 0 : i32
    return %c0_i32, %c0_i32_0 : i32, i32
  }
  func.func @transform_3(%arg0: i32, %arg1: i32) -> (i32, i32) {
    %c0_i32 = arith.constant 0 : i32
    %c0_i32_0 = arith.constant 0 : i32
    %c0_i32_1 = arith.constant 0 : i32
    return %c0_i32, %c0_i32_0 : i32, i32
  }
  func.func @transform_4(%arg0: i32, %arg1: i32) -> (i32, i32) {
    %c0_i32 = arith.constant 0 : i32
    %c0_i32_0 = arith.constant 0 : i32
    %c0_i32_1 = arith.constant 0 : i32
    return %c0_i32, %c0_i32_0 : i32, i32
  }
  func.func @transform_5(%arg0: i32, %arg1: i32) -> (i32, i32) {
    %c0_i32 = arith.constant 0 : i32
    %c0_i32_0 = arith.constant 0 : i32
    %c0_i32_1 = arith.constant 0 : i32
    return %c0_i32, %c0_i32_0 : i32, i32
  }
  func.func @transform_6(%arg0: i32, %arg1: i32) -> (i32, i32) {
    %c0_i32 = arith.constant 0 : i32
    %c0_i32_0 = arith.constant 0 : i32
    %c0_i32_1 = arith.constant 0 : i32
    return %c0_i32, %c0_i32_0 : i32, i32
  }
  func.func @transform_7(%arg0: i32, %arg1: i32) -> (i32, i32) {
    %c0_i32 = arith.constant 0 : i32
    %c0_i32_0 = arith.constant 0 : i32
    %c0_i32_1 = arith.constant 0 : i32
    return %c0_i32, %c0_i32_0 : i32, i32
  }
  func.func @transform_8(%arg0: i32, %arg1: i32) -> (i32, i32) {
    %c0_i32 = arith.constant 0 : i32
    %c0_i32_0 = arith.constant 0 : i32
    return %arg0, %c0_i32 : i32, i32
  }
}

</mosaic_0001>

<llo_original>
// kernel: tpu_custom_call.1
$region0: #{tpu_custom_call.1}
  #allocation0 [shape = 'u32[]', space=smem, size = 0x4, offset = 0x4, fixed_abs, tag = 'smem constant byte address 0x4 - core index']
  #allocation1 [shape = 'u32[144,128]{1,0:T(1,128)}', space=vmem, size = 0x12000, scoped, tag = 'internal scratch']
  #allocation2 [shape = 'f32[8,32]{1,0:T(8,128)}', space=vmem, size = 0x1000, scoped, tag = 'scratch operand']
  #allocation3 [shape = 'f32[8,1]{1,0:T(8,128)}', space=vmem, size = 0x1000, scoped, tag = 'scratch operand']
  %s0 = inlined_call_operand.vmem [shape: bf16[8,8,32], index: 0, kind: input, shape index: {}]
  %s1 = inlined_call_operand.vmem [shape: f32[8,8], index: 1, kind: input, shape index: {}]
  %s2 = inlined_call_operand.vmem [shape: f32[32,128], index: 2, kind: input, shape index: {}]
  %s3 = inlined_call_operand.vmem [shape: f32[1,128], index: 3, kind: input, shape index: {}]
  %s4 = inlined_call_operand.vmem [shape: f32[128,64], index: 4, kind: input, shape index: {}]
  %s5 = inlined_call_operand.vmem [shape: f32[1,64], index: 5, kind: input, shape index: {}]
  %s6 = inlined_call_operand.vmem [shape: f32[64,128], index: 6, kind: input, shape index: {}]
  %s7 = inlined_call_operand.vmem [shape: f32[1,128], index: 7, kind: input, shape index: {}]
  %s8 = inlined_call_operand.hbm [shape: f32[8,128], index: 8, kind: output, shape index: {}]
  %s9 = sld [smem:[#allocation0]]
  $region50: #{tpu_custom_call.1} parent=0
    _
  %s11 = ssub.s32 1, %s9
  %s12 = scalar_select 0, %s11, %s9
  $region1: #{tpu_custom_call.1} parent=0
    #allocation4 [shape = 'u8[4096]{0}', space=vmem, size = 0x1000, scoped, tag = 'output window, operand 0, single buffered']
    #allocation5 [shape = 's32[1]{0}', space=sflag, size = 0x4, scoped, tag = 'scoped memory for tpu_custom_call.1']
    %13 = vsyncpa [#allocation5], 0
    // Predicated region
    $region2: #{tpu_custom_call.1} parent=1 // pred_check
      _
    $region3: #{tpu_custom_call.1} parent=1 // pred_check_branch
      %15 = sbr.rel (0) target = $region5
    $region4: #{tpu_custom_call.1} parent=1 // pred_region
      _
    $region5: #{tpu_custom_call.1} parent=1 // pred_fallthru
      _
    // Predicated region
    $region6: #{tpu_custom_call.1} parent=1 // pred_check
      _
    $region7: #{tpu_custom_call.1} parent=1 // pred_check_branch
      %17 = sbr.rel (0) target = $region9
    $region8: #{tpu_custom_call.1} parent=1 // pred_region
      _
    $region9: #{tpu_custom_call.1} parent=1 // pred_fallthru
      _
    // Predicated region
    $region10: #{tpu_custom_call.1} parent=1 // pred_check
      _
    $region11: #{tpu_custom_call.1} parent=1 // pred_check_branch
      %19 = sbr.rel (0) target = $region13
    $region12: #{tpu_custom_call.1} parent=1 // pred_region
      _
    $region13: #{tpu_custom_call.1} parent=1 // pred_fallthru
      _
    // Predicated region
    $region14: #{tpu_custom_call.1} parent=1 // pred_check
      _
    $region15: #{tpu_custom_call.1} parent=1 // pred_check_branch
      %21 = sbr.rel (0) target = $region17
    $region16: #{tpu_custom_call.1} parent=1 // pred_region
      _
    $region17: #{tpu_custom_call.1} parent=1 // pred_fallthru
      _
    // Predicated region
    $region18: #{tpu_custom_call.1} parent=1 // pred_check
      _
    $region19: #{tpu_custom_call.1} parent=1 // pred_check_branch
      %23 = sbr.rel (0) target = $region21
    $region20: #{tpu_custom_call.1} parent=1 // pred_region
      _
    $region21: #{tpu_custom_call.1} parent=1 // pred_fallthru
      _
    // Predicated region
    $region22: #{tpu_custom_call.1} parent=1 // pred_check
      _
    $region23: #{tpu_custom_call.1} parent=1 // pred_check_branch
      %25 = sbr.rel (0) target = $region25
    $region24: #{tpu_custom_call.1} parent=1 // pred_region
      _
    $region25: #{tpu_custom_call.1} parent=1 // pred_fallthru
      _
    // Predicated region
    $region26: #{tpu_custom_call.1} parent=1 // pred_check
      _
    $region27: #{tpu_custom_call.1} parent=1 // pred_check_branch
      %27 = sbr.rel (0) target = $region29
    $region28: #{tpu_custom_call.1} parent=1 // pred_region
      _
    $region29: #{tpu_custom_call.1} parent=1 // pred_fallthru
      _
    // Predicated region
    $region30: #{tpu_custom_call.1} parent=1 // pred_check
      _
    $region31: #{tpu_custom_call.1} parent=1 // pred_check_branch
      %29 = sbr.rel (0) target = $region33
    $region32: #{tpu_custom_call.1} parent=1 // pred_region
      _
    $region33: #{tpu_custom_call.1} parent=1 // pred_fallthru
      _
    %p30 = scmp.eq.s32.totalorder 0, 0
    // Predicated region
    $region34: #{tpu_custom_call.1} parent=1 // pred_check
      %p31 = pneg %p30
    $region35: #{tpu_custom_call.1} parent=1 // pred_check_branch
      %33 = sbr.rel (%p31) target = $region37
    $region36: #{tpu_custom_call.1} parent=1 // pred_region
      %vm34 = vcmask 261120
      %35 = vst.msk [vmem:[#allocation2] sm:$0xff] %vm34, 0.0
      %vm36 = vcmask 7168
      %37 = vst.msk [vmem:[#allocation3] sm:$0xff] %vm36, 0.0
    $region37: #{tpu_custom_call.1} parent=1 // pred_fallthru
      _
    %v38 = vld [vmem:[%s0] sm:$0xf]
    %v39 = vld [vmem:[%s0 + $0x4] sm:$0xf]
    %v40 = vld [vmem:[%s0 + $0x8] sm:$0xf]
    %v41 = vld [vmem:[%s0 + $0xc] sm:$0xf]
    %v42 = vld [vmem:[%s0 + $0x10] sm:$0xf]
    %v43 = vld [vmem:[%s0 + $0x14] sm:$0xf]
    %v44 = vld [vmem:[%s0 + $0x18] sm:$0xf]
    %v45 = vld [vmem:[%s0 + $0x1c] sm:$0xf]
    %v46 = vunpack.c.l.bf16 %v38
    %v47 = vunpack.c.l.bf16 %v39
    %v48 = vunpack.c.l.bf16 %v40
    %v49 = vunpack.c.l.bf16 %v41
    %v50 = vunpack.c.l.bf16 %v42
    %v51 = vunpack.c.l.bf16 %v43
    %v52 = vunpack.c.l.bf16 %v44
    %v53 = vunpack.c.l.bf16 %v45
    %v54 = vld [vmem:[%s1] sm:$0xff]
    %v55 = vld [vmem:[#allocation2] sm:$0xff]
    %v56 = vlaneseq
    %v57 = vshrl.u32 %v56, 7
    %v58 = vsub.s32 0, %v57
    %v59 = vrot.slane %v54, %v58
    %61 = vbcast.lane.b32.xlu0 %v59, 256
    %v62 = vpop.permute.xlu0 %61
    %v63 = vlaneseq
    %v64 = vshrl.u32 %v63, 7
    %v65 = vsub.s32 1, %v64
    %v66 = vrot.slane %v54, %v65
    %68 = vbcast.lane.b32.xlu0 %v66, 256
    %v69 = vpop.permute.xlu0 %68
    %v70 = vlaneseq
    %v71 = vshrl.u32 %v70, 7
    %v72 = vsub.s32 2, %v71
    %v73 = vrot.slane %v54, %v72
    %75 = vbcast.lane.b32.xlu0 %v73, 256
    %v76 = vpop.permute.xlu0 %75
    %v77 = vlaneseq
    %v78 = vshrl.u32 %v77, 7
    %v79 = vsub.s32 3, %v78
    %v80 = vrot.slane %v54, %v79
    %82 = vbcast.lane.b32.xlu0 %v80, 256
    %v83 = vpop.permute.xlu0 %82
    %v84 = vlaneseq
    %v85 = vshrl.u32 %v84, 7
    %v86 = vsub.s32 4, %v85
    %v87 = vrot.slane %v54, %v86
    %89 = vbcast.lane.b32.xlu0 %v87, 256
    %v90 = vpop.permute.xlu0 %89
    %v91 = vlaneseq
    %v92 = vshrl.u32 %v91, 7
    %v93 = vsub.s32 5, %v92
    %v94 = vrot.slane %v54, %v93
    %96 = vbcast.lane.b32.xlu0 %v94, 256
    %v97 = vpop.permute.xlu0 %96
    %v98 = vlaneseq
    %v99 = vshrl.u32 %v98, 7
    %v100 = vsub.s32 6, %v99
    %v101 = vrot.slane %v54, %v100
    %103 = vbcast.lane.b32.xlu0 %v101, 256
    %v104 = vpop.permute.xlu0 %103
    %v105 = vlaneseq
    %v106 = vshrl.u32 %v105, 7
    %v107 = vsub.s32 7, %v106
    %v108 = vrot.slane %v54, %v107
    %110 = vbcast.lane.b32.xlu0 %v108, 256
    %v111 = vpop.permute.xlu0 %110
    %v112 = vmul.f32 %v46, %v62
    %v113 = vmul.f32 %v47, %v69
    %v114 = vmul.f32 %v48, %v76
    %v115 = vmul.f32 %v49, %v83
    %v116 = vmul.f32 %v50, %v90
    %v117 = vmul.f32 %v51, %v97
    %v118 = vmul.f32 %v52, %v104
    %v119 = vmul.f32 %v53, %v111
    %vm120 = vcmask 261120
    %v121 = vsel %vm120, %v112, 0.0
    %v122 = vrot.slane %v121, 4
    %v123 = vadd.f32 %v121, %v122
    %v124 = vrot.slane %v123, 2
    %v125 = vadd.f32 %v123, %v124
    %v126 = vrot.slane %v125, 1
    %v127 = vadd.f32 %v125, %v126
    %v128 = vsel %vm120, %v113, 0.0
    %v129 = vrot.slane %v128, 4
    %v130 = vadd.f32 %v128, %v129
    %v131 = vrot.slane %v130, 2
    %v132 = vadd.f32 %v130, %v131
    %v133 = vrot.slane %v132, 1
    %v134 = vadd.f32 %v132, %v133
    %v135 = vsel %vm120, %v114, 0.0
    %v136 = vrot.slane %v135, 4
    %v137 = vadd.f32 %v135, %v136
    %v138 = vrot.slane %v137, 2
    %v139 = vadd.f32 %v137, %v138
    %v140 = vrot.slane %v139, 1
    %v141 = vadd.f32 %v139, %v140
    %v142 = vsel %vm120, %v115, 0.0
    %v143 = vrot.slane %v142, 4
    %v144 = vadd.f32 %v142, %v143
    %v145 = vrot.slane %v144, 2
    %v146 = vadd.f32 %v144, %v145
    %v147 = vrot.slane %v146, 1
    %v148 = vadd.f32 %v146, %v147
    %v149 = vsel %vm120, %v116, 0.0
    %v150 = vrot.slane %v149, 4
    %v151 = vadd.f32 %v149, %v150
    %v152 = vrot.slane %v151, 2
    %v153 = vadd.f32 %v151, %v152
    %v154 = vrot.slane %v153, 1
    %v155 = vadd.f32 %v153, %v154
    %v156 = vsel %vm120, %v117, 0.0
    %v157 = vrot.slane %v156, 4
    %v158 = vadd.f32 %v156, %v157
    %v159 = vrot.slane %v158, 2
    %v160 = vadd.f32 %v158, %v159
    %v161 = vrot.slane %v160, 1
    %v162 = vadd.f32 %v160, %v161
    %v163 = vsel %vm120, %v118, 0.0
    %v164 = vrot.slane %v163, 4
    %v165 = vadd.f32 %v163, %v164
    %v166 = vrot.slane %v165, 2
    %v167 = vadd.f32 %v165, %v166
    %v168 = vrot.slane %v167, 1
    %v169 = vadd.f32 %v167, %v168
    %v170 = vsel %vm120, %v119, 0.0
    %v171 = vrot.slane %v170, 4
    %v172 = vadd.f32 %v170, %v171
    %v173 = vrot.slane %v172, 2
    %v174 = vadd.f32 %v172, %v173
    %v175 = vrot.slane %v174, 1
    %v176 = vadd.f32 %v174, %v175
    %vm185 = vcmask 1041409
    %v186 = vsel %vm185, %v134, %v127
    %vm187 = vcmask 1042434
    %v188 = vsel %vm187, %v141, %v186
    %vm189 = vcmask 1043459
    %v190 = vsel %vm189, %v148, %v188
    %vm191 = vcmask 1044484
    %v192 = vsel %vm191, %v155, %v190
    %vm193 = vcmask 1045509
    %v194 = vsel %vm193, %v162, %v192
    %vm195 = vcmask 1046534
    %v196 = vsel %vm195, %v169, %v194
    %vm197 = vcmask 1047559
    %v198 = vsel %vm197, %v176, %v196
    %v200 = vadd.f32 %v55, %v198
    %201 = vst.msk [vmem:[#allocation2] sm:$0xff] %vm120, %v200
    %v202 = vld [vmem:[#allocation3] sm:$0xff]
    %vm203 = vcmask 64512
    %v204 = vsel %vm203, %v54, 0.0
    %205 = vadd.xlane.f32.xlu0 %v204
    %v206 = vpop.xlane.xlu0 %205
    %v207 = vadd.f32 %v202, %v206
    %vm208 = vcmask 7168
    %209 = vst.msk [vmem:[#allocation3] sm:$0xff] %vm208, %v207
    // Predicated region
    $region38: #{tpu_custom_call.1} parent=1 // pred_check
      %p210 = pneg %p30
    $region39: #{tpu_custom_call.1} parent=1 // pred_check_branch
      %212 = sbr.rel (%p210) target = $region41
    $region40: #{tpu_custom_call.1} parent=1 // pred_region
      %v213 = vld [vmem:[#allocation2] sm:$0xff]
      %v214 = vld [vmem:[#allocation3] sm:$0xff]
      %v215 = vrcp.pop %v214
      %217 = vset.pattern.permute.xlu0 0
      %218 = vperm.xlu0 %217, %v215
      %v219 = vpop.permute.xlu0 %218
      %v221 = vmul.f32 %v213, %v219
      %v222 = vld [vmem:[%s2] sm:$0xff]
      %v223 = vld [vmem:[%s2 + $0x8] sm:$0xff]
      %v224 = vld [vmem:[%s2 + $0x10] sm:$0xff]
      %v225 = vld [vmem:[%s2 + $0x18] sm:$0xff]
      %v226 = vld [vmem:[%s3] sm:$0x1]
      %v228 = vlaneseq
      %v229 = vshrl.u32 %v228, 7
      %v230 = vsub.s32 0, %v229
      %v231 = vrot.slane %v226, %v230
      %v234 = vsel %vm120, %v221, 0
      %236 = vmatprep.subr.mxu0 0.0
      %237 = vmatpush1.msra.mxu0 0.0
      %238 = vmatprep.subr.mxu0 0.0
      %239 = vmatpush1.msra.mxu0 0.0
      %240 = vmatprep.subr.mxu0 0.0
      %241 = vmatpush1.msra.mxu0 0.0
      %242 = vmatprep.subr.mxu0 0.0
      %243 = vmatpush1.msra.mxu0 0.0
      %244 = vmatprep.subr.mxu0 0.0
      %245 = vmatpush1.msra.mxu0 0.0
      %246 = vmatprep.subr.mxu0 0.0
      %247 = vmatpush1.msra.mxu0 0.0
      %248 = vmatprep.subr.mxu0 0.0
      %249 = vmatpush1.msra.mxu0 0.0
      %250 = vmatprep.subr.mxu0 0.0
      %251 = vmatpush1.msra.mxu0 0.0
      %252 = vmatprep.subr.mxu0 0.0
      %253 = vmatpush1.msra.mxu0 0.0
      %254 = vmatprep.subr.mxu0 0.0
      %255 = vmatpush1.msra.mxu0 0.0
      %256 = vmatprep.subr.mxu0 0.0
      %257 = vmatpush1.msra.mxu0 0.0
      %258 = vmatprep.subr.mxu0 0.0
      %259 = vmatpush1.msra.mxu0 0.0
      %260 = vmatprep.subr.mxu0 0.0
      %261 = vmatpush1.msra.mxu0 %v225
      %262 = vmatprep.subr.mxu0 0.0
      %263 = vmatpush1.msra.mxu0 %v224
      %264 = vmatprep.subr.mxu0 0.0
      %265 = vmatpush1.msra.mxu0 %v223
      %266 = vmatprep.subr.mxu0 0.0
      %267 = vmatpush1.msra.mxu0 %v222
      %268 = vmatprep.subr.mxu0 0.0
      %269 = vmatpush2.msra.mxu0 0.0
      %270 = vmatprep.subr.mxu0 0.0
      %271 = vmatpush2.msra.mxu0 0.0
      %272 = vmatprep.subr.mxu0 0.0
      %273 = vmatpush2.msra.mxu0 0.0
      %274 = vmatprep.subr.mxu0 0.0
      %275 = vmatpush2.msra.mxu0 0.0
      %276 = vmatprep.subr.mxu0 0.0
      %277 = vmatpush2.msra.mxu0 0.0
      %278 = vmatprep.subr.mxu0 0.0
      %279 = vmatpush2.msra.mxu0 0.0
      %280 = vmatprep.subr.mxu0 0.0
      %281 = vmatpush2.msra.mxu0 0.0
      %282 = vmatprep.subr.mxu0 0.0
      %283 = vmatpush2.msra.mxu0 0.0
      %284 = vmatprep.subr.mxu0 0.0
      %285 = vmatpush2.msra.mxu0 0.0
      %286 = vmatprep.subr.mxu0 0.0
      %287 = vmatpush2.msra.mxu0 0.0
      %288 = vmatprep.subr.mxu0 0.0
      %289 = vmatpush2.msra.mxu0 0.0
      %290 = vmatprep.subr.mxu0 0.0
      %291 = vmatpush2.msra.mxu0 0.0
      %292 = vmatprep.subr.mxu0 0.0
      %293 = vmatpush2.msra.mxu0 0.0
      %294 = vmatprep.subr.mxu0 0.0
      %295 = vmatpush2.msra.mxu0 0.0
      %296 = vmatprep.subr.mxu0 0.0
      %297 = vmatpush2.msra.mxu0 0.0
      %298 = vmatprep.subr.mxu0 0.0
      %299 = vmatpush2.msra.mxu0 0.0
      %300 = vmatprep.mubr.f32.mxu0 0.0
      %301 = vmatmul.mubr.f32.gmra.mxu0 %v234
      %v302 = vpop.f32.mrf.mxu0
      %v303 = vadd.f32 %v231, %v302
      %v304 = vpop.f32.mrf.mxu0
      %305 = vdwg.mxu0
      %v306 = vmax.f32 %v303, 0.0
      %v307 = vld [vmem:[%s4] sm:$0xff]
      %v308 = vld [vmem:[%s4 + $0x8] sm:$0xff]
      %v309 = vld [vmem:[%s4 + $0x10] sm:$0xff]
      %v310 = vld [vmem:[%s4 + $0x18] sm:$0xff]
      %v311 = vld [vmem:[%s4 + $0x20] sm:$0xff]
      %v312 = vld [vmem:[%s4 + $0x28] sm:$0xff]
      %v313 = vld [vmem:[%s4 + $0x30] sm:$0xff]
      %v314 = vld [vmem:[%s4 + $0x38] sm:$0xff]
      %v315 = vld [vmem:[%s4 + $0x40] sm:$0xff]
      %v316 = vld [vmem:[%s4 + $0x48] sm:$0xff]
      %v317 = vld [vmem:[%s4 + $0x50] sm:$0xff]
      %v318 = vld [vmem:[%s4 + $0x58] sm:$0xff]
      %v319 = vld [vmem:[%s4 + $0x60] sm:$0xff]
      %v320 = vld [vmem:[%s4 + $0x68] sm:$0xff]
      %v321 = vld [vmem:[%s4 + $0x70] sm:$0xff]
      %v322 = vld [vmem:[%s4 + $0x78] sm:$0xff]
      %v323 = vld [vmem:[%s5] sm:$0x1]
      %v325 = vlaneseq
      %v326 = vshrl.u32 %v325, 7
      %v327 = vsub.s32 0, %v326
      %v328 = vrot.slane %v323, %v327
      %330 = vmatprep.subr.mxu0 0.0
      %331 = vmatpush1.msra.mxu0 %v322
      %332 = vmatprep.subr.mxu0 0.0
      %333 = vmatpush1.msra.mxu0 %v321
      %334 = vmatprep.subr.mxu0 0.0
      %335 = vmatpush1.msra.mxu0 %v320
      %336 = vmatprep.subr.mxu0 0.0
      %337 = vmatpush1.msra.mxu0 %v319
      %338 = vmatprep.subr.mxu0 0.0
      %339 = vmatpush1.msra.mxu0 %v318
      %340 = vmatprep.subr.mxu0 0.0
      %341 = vmatpush1.msra.mxu0 %v317
      %342 = vmatprep.subr.mxu0 0.0
      %343 = vmatpush1.msra.mxu0 %v316
      %344 = vmatprep.subr.mxu0 0.0
      %345 = vmatpush1.msra.mxu0 %v315
      %346 = vmatprep.subr.mxu0 0.0
      %347 = vmatpush1.msra.mxu0 %v314
      %348 = vmatprep.subr.mxu0 0.0
      %349 = vmatpush1.msra.mxu0 %v313
      %350 = vmatprep.subr.mxu0 0.0
      %351 = vmatpush1.msra.mxu0 %v312
      %352 = vmatprep.subr.mxu0 0.0
      %353 = vmatpush1.msra.mxu0 %v311
      %354 = vmatprep.subr.mxu0 0.0
      %355 = vmatpush1.msra.mxu0 %v310
      %356 = vmatprep.subr.mxu0 0.0
      %357 = vmatpush1.msra.mxu0 %v309
      %358 = vmatprep.subr.mxu0 0.0
      %359 = vmatpush1.msra.mxu0 %v308
      %360 = vmatprep.subr.mxu0 0.0
      %361 = vmatpush1.msra.mxu0 %v307
      %362 = vmatprep.subr.mxu0 0.0
      %363 = vmatpush2.msra.mxu0 0.0
      %364 = vmatprep.subr.mxu0 0.0
      %365 = vmatpush2.msra.mxu0 0.0
      %366 = vmatprep.subr.mxu0 0.0
      %367 = vmatpush2.msra.mxu0 0.0
      %368 = vmatprep.subr.mxu0 0.0
      %369 = vmatpush2.msra.mxu0 0.0
      %370 = vmatprep.subr.mxu0 0.0
      %371 = vmatpush2.msra.mxu0 0.0
      %372 = vmatprep.subr.mxu0 0.0
      %373 = vmatpush2.msra.mxu0 0.0
      %374 = vmatprep.subr.mxu0 0.0
      %375 = vmatpush2.msra.mxu0 0.0
      %376 = vmatprep.subr.mxu0 0.0
      %377 = vmatpush2.msra.mxu0 0.0
      %378 = vmatprep.subr.mxu0 0.0
      %379 = vmatpush2.msra.mxu0 0.0
      %380 = vmatprep.subr.mxu0 0.0
      %381 = vmatpush2.msra.mxu0 0.0
      %382 = vmatprep.subr.mxu0 0.0
      %383 = vmatpush2.msra.mxu0 0.0
      %384 = vmatprep.subr.mxu0 0.0
      %385 = vmatpush2.msra.mxu0 0.0
      %386 = vmatprep.subr.mxu0 0.0
      %387 = vmatpush2.msra.mxu0 0.0
      %388 = vmatprep.subr.mxu0 0.0
      %389 = vmatpush2.msra.mxu0 0.0
      %390 = vmatprep.subr.mxu0 0.0
      %391 = vmatpush2.msra.mxu0 0.0
      %392 = vmatprep.subr.mxu0 0.0
      %393 = vmatpush2.msra.mxu0 0.0
      %394 = vmatprep.mubr.f32.mxu0 0.0
      %395 = vmatmul.mubr.f32.gmra.mxu0 %v306
      %v396 = vpop.f32.mrf.mxu0
      %v397 = vadd.f32 %v328, %v396
      %v398 = vpop.f32.mrf.mxu0
      %399 = vdwg.mxu0
      %v400 = vmax.f32 %v397, 0.0
      %v401 = vld [vmem:[%s6] sm:$0xff]
      %v402 = vld [vmem:[%s6 + $0x8] sm:$0xff]
      %v403 = vld [vmem:[%s6 + $0x10] sm:$0xff]
      %v404 = vld [vmem:[%s6 + $0x18] sm:$0xff]
      %v405 = vld [vmem:[%s6 + $0x20] sm:$0xff]
      %v406 = vld [vmem:[%s6 + $0x28] sm:$0xff]
      %v407 = vld [vmem:[%s6 + $0x30] sm:$0xff]
      %v408 = vld [vmem:[%s6 + $0x38] sm:$0xff]
      %v409 = vld [vmem:[%s7] sm:$0x1]
      %v411 = vlaneseq
      %v412 = vshrl.u32 %v411, 7
      %v413 = vsub.s32 0, %v412
      %v414 = vrot.slane %v409, %v413
      %vm416 = vcmask 523264
      %v418 = vsel %vm416, %v400, 0
      %420 = vmatprep.subr.mxu0 0.0
      %421 = vmatpush1.msra.mxu0 0.0
      %422 = vmatprep.subr.mxu0 0.0
      %423 = vmatpush1.msra.mxu0 0.0
      %424 = vmatprep.subr.mxu0 0.0
      %425 = vmatpush1.msra.mxu0 0.0
      %426 = vmatprep.subr.mxu0 0.0
      %427 = vmatpush1.msra.mxu0 0.0
      %428 = vmatprep.subr.mxu0 0.0
      %429 = vmatpush1.msra.mxu0 0.0
      %430 = vmatprep.subr.mxu0 0.0
      %431 = vmatpush1.msra.mxu0 0.0
      %432 = vmatprep.subr.mxu0 0.0
      %433 = vmatpush1.msra.mxu0 0.0
      %434 = vmatprep.subr.mxu0 0.0
      %435 = vmatpush1.msra.mxu0 0.0
      %436 = vmatprep.subr.mxu0 0.0
      %437 = vmatpush1.msra.mxu0 %v408
      %438 = vmatprep.subr.mxu0 0.0
      %439 = vmatpush1.msra.mxu0 %v407
      %440 = vmatprep.subr.mxu0 0.0
      %441 = vmatpush1.msra.mxu0 %v406
      %442 = vmatprep.subr.mxu0 0.0
      %443 = vmatpush1.msra.mxu0 %v405
      %444 = vmatprep.subr.mxu0 0.0
      %445 = vmatpush1.msra.mxu0 %v404
      %446 = vmatprep.subr.mxu0 0.0
      %447 = vmatpush1.msra.mxu0 %v403
      %448 = vmatprep.subr.mxu0 0.0
      %449 = vmatpush1.msra.mxu0 %v402
      %450 = vmatprep.subr.mxu0 0.0
      %451 = vmatpush1.msra.mxu0 %v401
      %452 = vmatprep.subr.mxu0 0.0
      %453 = vmatpush2.msra.mxu0 0.0
      %454 = vmatprep.subr.mxu0 0.0
      %455 = vmatpush2.msra.mxu0 0.0
      %456 = vmatprep.subr.mxu0 0.0
      %457 = vmatpush2.msra.mxu0 0.0
      %458 = vmatprep.subr.mxu0 0.0
      %459 = vmatpush2.msra.mxu0 0.0
      %460 = vmatprep.subr.mxu0 0.0
      %461 = vmatpush2.msra.mxu0 0.0
      %462 = vmatprep.subr.mxu0 0.0
      %463 = vmatpush2.msra.mxu0 0.0
      %464 = vmatprep.subr.mxu0 0.0
      %465 = vmatpush2.msra.mxu0 0.0
      %466 = vmatprep.subr.mxu0 0.0
      %467 = vmatpush2.msra.mxu0 0.0
      %468 = vmatprep.subr.mxu0 0.0
      %469 = vmatpush2.msra.mxu0 0.0
      %470 = vmatprep.subr.mxu0 0.0
      %471 = vmatpush2.msra.mxu0 0.0
      %472 = vmatprep.subr.mxu0 0.0
      %473 = vmatpush2.msra.mxu0 0.0
      %474 = vmatprep.subr.mxu0 0.0
      %475 = vmatpush2.msra.mxu0 0.0
      %476 = vmatprep.subr.mxu0 0.0
      %477 = vmatpush2.msra.mxu0 0.0
      %478 = vmatprep.subr.mxu0 0.0
      %479 = vmatpush2.msra.mxu0 0.0
      %480 = vmatprep.subr.mxu0 0.0
      %481 = vmatpush2.msra.mxu0 0.0
      %482 = vmatprep.subr.mxu0 0.0
      %483 = vmatpush2.msra.mxu0 0.0
      %484 = vmatprep.mubr.f32.mxu0 0.0
      %485 = vmatmul.mubr.f32.gmra.mxu0 %v418
      %v486 = vpop.f32.mrf.mxu0
      %v487 = vadd.f32 %v414, %v486
      %v488 = vpop.f32.mrf.mxu0
      %489 = vdwg.mxu0
      %490 = vst [vmem:[#allocation4] sm:$0xff] %v487
    $region41: #{tpu_custom_call.1} parent=1 // pred_fallthru
      _
    // Predicated region
    $region42: #{tpu_custom_call.1} parent=1 // pred_check
      _
    $region43: #{tpu_custom_call.1} parent=1 // pred_check_branch
      %492 = sbr.rel (0) target = $region45
    $region44: #{tpu_custom_call.1} parent=1 // pred_region
      %s494 = ssub.s32 128, 128
      %495 = vsyncadd [#allocation5], %s494
      %s497 = sshll.u32 [#allocation4], 4
      %s498 = int_to_ptr.vmem [resolvable:$true] %s497
      %500 = dma.vmem_to_hbm [thread:$0]  %s498, 128, %s8, [#allocation5]
    $region45: #{tpu_custom_call.1} parent=1 // pred_fallthru
      _
    // Predicated region
    $region46: #{tpu_custom_call.1} parent=1 // pred_check
      _
    $region47: #{tpu_custom_call.1} parent=1 // pred_check_branch
      %502 = sbr.rel (0) target = $region49
    $region48: #{tpu_custom_call.1} parent=1 // pred_region
      %503 = dma.done [#allocation5], 128
    $region49: #{tpu_custom_call.1} parent=1 // pred_fallthru
      _
    %504 = vsyncpa [#allocation5], 1

</llo_original>
